<compile_context>
chip_gen: v5e
topology: v5e:2x2
jax: 0.10.0
libtpu: 0.0.40
codegen_flags: <defaults>
</compile_context>

<pallas_src>
import functools

import jax
import jax.numpy as jnp
from jax.experimental import pallas as pl
from jax.experimental.pallas import tpu as pltpu


# --------------------------------------------------------------------------
# Pass 1: tiled per-channel sum / max reduction over the spatial axis.
# --------------------------------------------------------------------------
def _reduce_kernel(x_ref, sum_ref, max_ref, *, hw, tile):
    # x_ref:   (1, C, T) current spatial tile of one batch element
    # sum_ref: (1, C, 1) resident accumulator (same block across spatial axis)
    # max_ref: (1, C, 1) resident accumulator
    t = pl.program_id(1)

    @pl.when(t == 0)
    def _():
        sum_ref[...] = jnp.zeros_like(sum_ref)
        max_ref[...] = jnp.full(max_ref.shape, -jnp.inf, dtype=max_ref.dtype)

    x = x_ref[0].astype(jnp.float32)                     # (C, T), f32 accumulation

    if hw % tile != 0:
        # Edge-tile padding contents are undefined: mask them out.
        col = jax.lax.broadcasted_iota(jnp.int32, x.shape, 1) + t * tile
        valid = col < hw
        x_sum = jnp.where(valid, x, 0.0)
        x_max = jnp.where(valid, x, -jnp.inf)
    else:
        x_sum = x
        x_max = x

    part_sum = jnp.sum(x_sum, axis=-1, keepdims=True)    # (C, 1)
    part_max = jnp.max(x_max, axis=-1, keepdims=True)    # (C, 1)

    sum_ref[0] = sum_ref[0] + part_sum
    max_ref[0] = jnp.maximum(max_ref[0], part_max)


# --------------------------------------------------------------------------
# Pass 2: tiled broadcast multiply x * att (attention already computed in XLA).
# --------------------------------------------------------------------------
def _apply_kernel(att_ref, x_ref, o_ref):
    # att_ref: (1, C, 1)   per-batch per-channel attention (f32)
    # x_ref:   (1, C, T)   spatial tile
    # o_ref:   (1, C, T)
    x = x_ref[0].astype(jnp.float32)                     # f32 VPU path (v5e safe)
    o_ref[0] = (x * att_ref[0]).astype(o_ref.dtype)


def _choose_spatial_tile(c, hw, itemsize, target_lanes=2048,
                         budget_bytes=2 * 1024 * 1024):
    """Pick a lane-dense spatial tile: multiple of 128, <= ~budget per block."""
    max_by_budget = (budget_bytes // max(c * itemsize, 1)) // 128 * 128
    t = min(target_lanes, max(128, max_by_budget))
    if hw <= t:
        return hw                                        # full extent (always legal)
    return t


def channel_attention(x, w1, w2, *, spatial_tile=None):
    """x: (B, C, H, W); w1: (C//r, C); w2: (C, C//r). Returns (B, C, H, W)."""
    B, C, H, W = x.shape
    HW = H * W
    x_flat = x.reshape(B, C, HW)
    itemsize = jnp.dtype(x.dtype).itemsize

    if spatial_tile is None:
        T = _choose_spatial_tile(C, HW, itemsize)
    else:
        T = HW if spatial_tile >= HW else spatial_tile   # caller tile (mult of 128)
    n_t = pl.cdiv(HW, T)

    cparams_reduce = pltpu.CompilerParams(
        dimension_semantics=("parallel", "arbitrary"),
        vmem_limit_bytes=32 * 1024 * 1024)
    cparams_apply = pltpu.CompilerParams(
        dimension_semantics=("parallel", "parallel"),
        vmem_limit_bytes=32 * 1024 * 1024)

    # ---- Pass 1: pooled per-channel sum / max (f32 accumulators). ----
    sum_, max_ = pl.pallas_call(
        functools.partial(_reduce_kernel, hw=HW, tile=T),
        out_shape=(jax.ShapeDtypeStruct((B, C, 1), jnp.float32),
                   jax.ShapeDtypeStruct((B, C, 1), jnp.float32)),
        grid_spec=pltpu.PrefetchScalarGridSpec(
            num_scalar_prefetch=0,
            grid=(B, n_t),
            in_specs=[pl.BlockSpec((1, C, T), lambda b, t: (b, 0, t))],
            out_specs=(pl.BlockSpec((1, C, 1), lambda b, t: (b, 0, 0)),
                       pl.BlockSpec((1, C, 1), lambda b, t: (b, 0, 0))),
        ),
        compiler_params=cparams_reduce,
    )(x_flat)

    # ---- FC bottleneck in plain XLA (avg & max branches fused along batch). ----
    avg = sum_[..., 0] / jnp.float32(HW)                 # (B, C)
    mx = max_[..., 0]                                    # (B, C)
    pooled = jnp.concatenate([avg, mx], axis=0)          # (2B, C) — real M for MXU
    w1f = w1.astype(jnp.float32)
    w2f = w2.astype(jnp.float32)
    hidden = jnp.maximum(pooled @ w1f.T, 0.0)            # (2B, C//r)
    fc_out = hidden @ w2f.T                              # (2B, C)
    att = jax.nn.sigmoid(fc_out[:B] + fc_out[B:])        # (B, C)
    att3 = att[:, :, None].astype(jnp.float32)           # (B, C, 1)

    # ---- Pass 2: x * att, streamed in lane-dense spatial tiles. ----
    out_flat = pl.pallas_call(
        _apply_kernel,
        out_shape=jax.ShapeDtypeStruct((B, C, HW), x.dtype),
        grid_spec=pltpu.PrefetchScalarGridSpec(
            num_scalar_prefetch=0,
            grid=(B, n_t),
            in_specs=[pl.BlockSpec((1, C, 1), lambda b, t: (b, 0, 0)),
                      pl.BlockSpec((1, C, T), lambda b, t: (b, 0, t))],
            out_specs=pl.BlockSpec((1, C, T), lambda b, t: (b, 0, t)),
        ),
        compiler_params=cparams_apply,
    )(att3, x_flat)

    return out_flat.reshape(B, C, H, W)


def channel_attention_ref(x, w1, w2):
    """Pure-JAX reference mirroring the PyTorch forward."""
    xf = x.astype(jnp.float32)
    avg = jnp.mean(xf, axis=(2, 3))                      # (B, C)
    mx = jnp.max(xf, axis=(2, 3))                        # (B, C)
    fc = lambda v: jnp.maximum(v @ w1.T, 0.0) @ w2.T     # (B, C)
    att = jax.nn.sigmoid(fc(avg) + fc(mx))               # (B, C)
    return (xf * att[:, :, None, None]).astype(x.dtype)


if __name__ == "__main__":
    # Module config: channels must be >= reduction for the bottleneck to exist.
    B, C, H, W = 2, 32, 16, 16
    reduction = 16
    Cr = C // reduction  # 2

    key = jax.random.PRNGKey(0)
    kx, k1, k2 = jax.random.split(key, 3)

    x = jax.random.normal(kx, (B, C, H, W), dtype=jnp.float32)
    # Conv2d(C, C//r, 1, bias=False) weight: (C//r, C, 1, 1) -> squeeze to (C//r, C)
    w1 = jax.random.normal(k1, (Cr, C), dtype=jnp.float32) * 0.1
    # Conv2d(C//r, C, 1, bias=False) weight: (C, C//r, 1, 1) -> squeeze to (C, C//r)
    w2 = jax.random.normal(k2, (C, Cr), dtype=jnp.float32) * 0.1

    out = channel_attention(x, w1, w2)
    jax.block_until_ready(out)
    ref = channel_attention_ref(x, w1, w2)
    assert jnp.allclose(out, ref, atol=1e-5, rtol=1e-5), "mismatch vs reference"

    # Second check: forces spatial tiling with a partial (masked) edge tile.
    x2 = jax.random.normal(kx, (B, C, 48, 48), dtype=jnp.float32)  # HW=2304, T=512
    out2 = channel_attention(x2, w1, w2, spatial_tile=512)
    jax.block_until_ready(out2)
    ref2 = channel_attention_ref(x2, w1, w2)
    assert jnp.allclose(out2, ref2, atol=1e-5, rtol=1e-5), "mismatch (tiled/masked)"

    print("KERNEL_OK")
</pallas_src>

<mosaic_0001>
module attributes {stable_mosaic.version = 11 : i64} {
  func.func @_reduce_kernel(%arg0: i32, %arg1: i32, %arg2: memref<1x32x256xf32, #tpu.memory_space<vmem>>, %arg3: memref<1x32x1xf32, #tpu.memory_space<vmem>>, %arg4: memref<1x32x1xf32, #tpu.memory_space<vmem>>) attributes {dimension_semantics = [#tpu.dimension_semantics<parallel>, #tpu.dimension_semantics<arbitrary>], iteration_bounds = array<i64: 2, 1>, scalar_prefetch = 0 : i64, scratch_operands = 0 : i64, tpu.core_type = #tpu.core_type<tc>, window_params = [{transform_indices = @transform_0, window_bounds = array<i64: 1, 32, 256>}, {transform_indices = @transform_1, window_bounds = array<i64: 1, 32, 1>}, {transform_indices = @transform_2, window_bounds = array<i64: 1, 32, 1>}]} {
    %c0_i32 = arith.constant 0 : i32
    %0 = arith.cmpi eq, %arg1, %c0_i32 : i32
    %1 = arith.extui %0 : i1 to i32
    %c0_i32_0 = arith.constant 0 : i32
    %2 = arith.cmpi ne, %1, %c0_i32_0 : i32
    scf.if %2 {
      %cst_16 = arith.constant 0.000000e+00 : f32
      %21 = vector.broadcast %cst_16 : f32 to vector<1x32x1xf32>
      %c0_17 = arith.constant 0 : index
      %c0_18 = arith.constant 0 : index
      %c0_19 = arith.constant 0 : index
      %22 = vector.load %arg3[%c0_17, %c0_18, %c0_19] : memref<1x32x1xf32, #tpu.memory_space<vmem>>, vector<1x32x1xf32>
      tpu.vector_store %arg3[%c0_17, %c0_18, %c0_19], %21 {strides = array<i32>} : memref<1x32x1xf32, #tpu.memory_space<vmem>>, vector<1x32x1xf32>,
      %cst_20 = arith.constant 0xFF800000 : f32
      %23 = vector.broadcast %cst_20 : f32 to vector<1x32x1xf32>
      %c0_21 = arith.constant 0 : index
      %c0_22 = arith.constant 0 : index
      %c0_23 = arith.constant 0 : index
      %24 = vector.load %arg4[%c0_21, %c0_22, %c0_23] : memref<1x32x1xf32, #tpu.memory_space<vmem>>, vector<1x32x1xf32>
      tpu.vector_store %arg4[%c0_21, %c0_22, %c0_23], %23 {strides = array<i32>} : memref<1x32x1xf32, #tpu.memory_space<vmem>>, vector<1x32x1xf32>,
    } else {
    }
    %c0 = arith.constant 0 : index
    %c0_1 = arith.constant 0 : index
    %c0_2 = arith.constant 0 : index
    %3 = vector.load %arg2[%c0, %c0_1, %c0_2] : memref<1x32x256xf32, #tpu.memory_space<vmem>>, vector<1x32x256xf32>
    %4 = vector.shape_cast %3 : vector<1x32x256xf32> to vector<32x256xf32>
    %cst = arith.constant dense<0.000000e+00> : vector<32xf32>
    %5 = vector.multi_reduction <add>, %4, %cst [1] : vector<32x256xf32> to vector<32xf32>
    %6 = vector.shape_cast %5 : vector<32xf32> to vector<32x1xf32>
    %cst_3 = arith.constant dense<0xFF800000> : vector<32xf32>
    %7 = vector.multi_reduction <maximumf>, %4, %cst_3 [1] : vector<32x256xf32> to vector<32xf32>
    %8 = vector.shape_cast %7 : vector<32xf32> to vector<32x1xf32>
    %c0_4 = arith.constant 0 : index
    %c0_5 = arith.constant 0 : index
    %c0_6 = arith.constant 0 : index
    %9 = vector.load %arg3[%c0_4, %c0_5, %c0_6] : memref<1x32x1xf32, #tpu.memory_space<vmem>>, vector<1x32x1xf32>
    %10 = vector.shape_cast %9 : vector<1x32x1xf32> to vector<32x1xf32>
    %11 = arith.addf %10, %6 : vector<32x1xf32>
    %c0_7 = arith.constant 0 : index
    %c0_8 = arith.constant 0 : index
    %c0_9 = arith.constant 0 : index
    %12 = vector.load %arg3[%c0_7, %c0_8, %c0_9] : memref<1x32x1xf32, #tpu.memory_space<vmem>>, vector<1x32x1xf32>
    %13 = vector.shape_cast %12 : vector<1x32x1xf32> to vector<32x1xf32>
    %14 = vector.shape_cast %11 : vector<32x1xf32> to vector<1x32x1xf32>
    tpu.vector_store %arg3[%c0_7, %c0_8, %c0_9], %14 {strides = array<i32>} : memref<1x32x1xf32, #tpu.memory_space<vmem>>, vector<1x32x1xf32>,
    %c0_10 = arith.constant 0 : index
    %c0_11 = arith.constant 0 : index
    %c0_12 = arith.constant 0 : index
    %15 = vector.load %arg4[%c0_10, %c0_11, %c0_12] : memref<1x32x1xf32, #tpu.memory_space<vmem>>, vector<1x32x1xf32>
    %16 = vector.shape_cast %15 : vector<1x32x1xf32> to vector<32x1xf32>
    %17 = arith.maximumf %16, %8 : vector<32x1xf32>
    %c0_13 = arith.constant 0 : index
    %c0_14 = arith.constant 0 : index
    %c0_15 = arith.constant 0 : index
    %18 = vector.load %arg4[%c0_13, %c0_14, %c0_15] : memref<1x32x1xf32, #tpu.memory_space<vmem>>, vector<1x32x1xf32>
    %19 = vector.shape_cast %18 : vector<1x32x1xf32> to vector<32x1xf32>
    %20 = vector.shape_cast %17 : vector<32x1xf32> to vector<1x32x1xf32>
    tpu.vector_store %arg4[%c0_13, %c0_14, %c0_15], %20 {strides = array<i32>} : memref<1x32x1xf32, #tpu.memory_space<vmem>>, vector<1x32x1xf32>,
    return
  }
  func.func @transform_0(%arg0: i32, %arg1: i32) -> (i32, i32, i32) {
    %c0_i32 = arith.constant 0 : i32
    %c0_i32_0 = arith.constant 0 : i32
    return %arg0, %c0_i32, %arg1 : i32, i32, i32
  }
  func.func @transform_1(%arg0: i32, %arg1: i32) -> (i32, i32, i32) {
    %c0_i32 = arith.constant 0 : i32
    %c0_i32_0 = arith.constant 0 : i32
    %c0_i32_1 = arith.constant 0 : i32
    return %arg0, %c0_i32, %c0_i32_0 : i32, i32, i32
  }
  func.func @transform_2(%arg0: i32, %arg1: i32) -> (i32, i32, i32) {
    %c0_i32 = arith.constant 0 : i32
    %c0_i32_0 = arith.constant 0 : i32
    %c0_i32_1 = arith.constant 0 : i32
    return %arg0, %c0_i32, %c0_i32_0 : i32, i32, i32
  }
}

</mosaic_0001>

<llo_original>
// kernel: tpu_custom_call.1
$region0: #{tpu_custom_call.1}
  #allocation0 [shape = 'u32[]', space=smem, size = 0x4, offset = 0x4, fixed_abs, tag = 'smem constant byte address 0x4 - core index']
  #allocation1 [shape = 'u32[72,128]{1,0:T(1,128)}', space=vmem, size = 0x9000, scoped, tag = 'internal scratch']
  %s0 = inlined_call_operand.hbm [shape: f32[2,32,256], index: 0, kind: input, shape index: {}]
  %s1 = inlined_call_operand.vmem [shape: f32[2,32,1], index: 1, kind: output, shape index: {0}]
  %s2 = inlined_call_operand.vmem [shape: f32[2,32,1], index: 2, kind: output, shape index: {1}]
  %3 = xla_tuple %s1, %s2
  %s4 = sld [smem:[#allocation0]]
  $region53: #{tpu_custom_call.1} parent=0
    _
  %s6 = ssub.s32 1, %s4
  %s7 = scalar_select 0, %s6, %s4
  $region1: #{tpu_custom_call.1} parent=0
    #allocation2 [shape = 'u8[65536]{0}', space=vmem, size = 0x10000, scoped, tag = 'input window, operand 0']
    #allocation3 [shape = 's32[2]{0}', space=sflag, size = 0x8, scoped, tag = 'scoped memory for tpu_custom_call.1']
    %8 = vsyncpa [#allocation3], 0
    %s9 = scalar_lea.sflag [#allocation3], 1
    %10 = vsyncpa %s9, 0
    loop: start=0, step=1, limit=4
    $region2: #{tpu_custom_call.1} parent=1 // loop_pre_header
      _
    $region3: #{tpu_custom_call.1} parent=1 // loop_header
      %s12 = sphi 0, %s16
      %p13 = scmp.ge.s32.totalorder %s12, 4
      %s19 = sphi 0, %s31
      %s20 = sphi 0, %s27
      %s21 = sphi 0, %s19
      %s22 = sphi 0, %s20
      %s23 = sphi 0, %s21
      %s24 = sphi 0, %s22
      %s36 = sphi 0, %s38
      %s39 = sphi 0, %s36
      %s40 = sphi 0, %s39
      %s56 = sphi 0, %s40
      %s62 = sphi 0, %s64
      %s65 = sphi 0, %s62
      %s66 = sphi 0, %s65
      %s82 = sphi 0, %s66
      %s88 = sphi 0, %s90
      %s91 = sphi 0, %s88
      %s92 = sphi 0, %s91
      %s108 = sphi 0, %s92
    $region4: #{tpu_custom_call.1} parent=1 // loop_header_branch
      %15 = sbr.rel (%p13) target = $region8
    $region5: #{tpu_custom_call.1} parent=1 // loop_body
      %s17 = ssub.s32 %s12, 1
      %s18 = ssub.s32 %s12, 2
      %s25 = sadd.s32 1, %s20
      %p26 = scmp.ge.s32.totalorder %s25, 1
      %s27 = scalar_select %p26, 0, %s25
      %s28 = sadd.s32 1, %s19
      %s29 = scalar_select %p26, %s28, %s19
      %p30 = scmp.ge.s32.totalorder %s29, 2
      %s31 = scalar_select %p30, 0, %s29
      %s32 = ssub.s32 %s19, %s31
      %s33 = ssub.s32 %s20, %s27
      %s34 = sor.u32 %s32, %s33
      %p35 = scmp.eq.s32.totalorder %s34, 0
      %s37 = sadd.s32 %s36, 1
      %s38 = scalar_select %p35, %s36, %s37
      %p41 = pneg %p35
      %p42 = scmp.eq.s32.totalorder %s12, 1
      %p43 = por %p41, %p42
      %p44 = scmp.ne.s32.totalorder %s36, %s39
      %p45 = scmp.eq.s32.totalorder %s12, 0
      %p46 = por %p44, %p45
      %p47 = scmp.ne.s32.totalorder %s36, %s39
      %p48 = scmp.eq.s32.totalorder %s17, 1
      %p49 = por %p47, %p48
      %p50 = scmp.ne.s32.totalorder %s39, %s40
      %p51 = scmp.eq.s32.totalorder %s17, 0
      %p52 = por %p50, %p51
      %p53 = scmp.ne.s32.totalorder %s39, %s40
      %p54 = scmp.eq.s32.totalorder %s18, 1
      %p55 = por %p53, %p54
      %p57 = scmp.ne.s32.totalorder %s40, %s56
      %p58 = scmp.eq.s32.totalorder %s18, 0
      %p59 = por %p57, %p58
      %s60 = ssub.s32 %s19, %s31
      %p61 = scmp.eq.s32.totalorder %s60, 0
      %s63 = sadd.s32 %s62, 1
      %s64 = scalar_select %p61, %s62, %s63
      %p67 = pneg %p61
      %p68 = scmp.eq.s32.totalorder %s12, 1
      %p69 = por %p67, %p68
      %p70 = scmp.ne.s32.totalorder %s62, %s65
      %p71 = scmp.eq.s32.totalorder %s12, 0
      %p72 = por %p70, %p71
      %p73 = scmp.ne.s32.totalorder %s62, %s65
      %p74 = scmp.eq.s32.totalorder %s17, 1
      %p75 = por %p73, %p74
      %p76 = scmp.ne.s32.totalorder %s65, %s66
      %p77 = scmp.eq.s32.totalorder %s17, 0
      %p78 = por %p76, %p77
      %p79 = scmp.ne.s32.totalorder %s65, %s66
      %p80 = scmp.eq.s32.totalorder %s18, 1
      %p81 = por %p79, %p80
      %p83 = scmp.ne.s32.totalorder %s66, %s82
      %p84 = scmp.eq.s32.totalorder %s18, 0
      %p85 = por %p83, %p84
      %s86 = ssub.s32 %s19, %s31
      %p87 = scmp.eq.s32.totalorder %s86, 0
      %s89 = sadd.s32 %s88, 1
      %s90 = scalar_select %p87, %s88, %s89
      %p93 = pneg %p87
      %p94 = scmp.eq.s32.totalorder %s12, 1
      %p95 = por %p93, %p94
      %p96 = scmp.ne.s32.totalorder %s88, %s91
      %p97 = scmp.eq.s32.totalorder %s12, 0
      %p98 = por %p96, %p97
      %p99 = scmp.ne.s32.totalorder %s88, %s91
      %p100 = scmp.eq.s32.totalorder %s17, 1
      %p101 = por %p99, %p100
      %p102 = scmp.ne.s32.totalorder %s91, %s92
      %p103 = scmp.eq.s32.totalorder %s17, 0
      %p104 = por %p102, %p103
      %p105 = scmp.ne.s32.totalorder %s91, %s92
      %p106 = scmp.eq.s32.totalorder %s18, 1
      %p107 = por %p105, %p106
      %p109 = scmp.ne.s32.totalorder %s92, %s108
      %p110 = scmp.eq.s32.totalorder %s18, 0
      %p111 = por %p109, %p110
      %p112 = scmp.le.s32.totalorder 1, %s12
      %p113 = scmp.lt.s32.totalorder %s12, 3
      %p114 = pnand %p112, %p113
      %p115 = pneg %p114
      // Predicated region
      $region9: #{tpu_custom_call.1} parent=5 // pred_check
        _
      $region10: #{tpu_custom_call.1} parent=5 // pred_check_branch
        %117 = sbr.rel (%p114) target = $region12
      $region11: #{tpu_custom_call.1} parent=5 // pred_region
        %s118 = ssub.s32 %s12, 1
      $region12: #{tpu_custom_call.1} parent=5 // pred_fallthru
        _
      %p119 = scmp.lt.s32.totalorder %s12, 2
      // Predicated region
      $region13: #{tpu_custom_call.1} parent=5 // pred_check
        %p120 = pneg %p119
      $region14: #{tpu_custom_call.1} parent=5 // pred_check_branch
        %122 = sbr.rel (%p120) target = $region16
      $region15: #{tpu_custom_call.1} parent=5 // pred_region
        // Predicated region
        $region17: #{tpu_custom_call.1} parent=15 // pred_check
          %p123 = pneg %p46
        $region18: #{tpu_custom_call.1} parent=15 // pred_check_branch
          %125 = sbr.rel (%p123) target = $region20
        $region19: #{tpu_custom_call.1} parent=15 // pred_region
          %s126 = sand.u32 %s36, 1
          %s127 = scalar_lea.sflag [#allocation3], %s126
          %s128 = sand.u32 %s36, 1
          %s129 = smul.addr %s128, 64
          %s130 = scalar_lea.vmem [#allocation2], %s129
          %s131 = smul.u32 2, %s20
          %133 = vsyncadd %s127, 0
          %s134 = smul.addr %s19, 8
          %s135 = sadd.s32 %s131, %s134
          %s136 = smul.addr %s135, 8
          %s137 = scalar_lea.hbm %s0, %s136
          %s138 = sshll.u32 %s137, 4
          %s139 = int_to_ptr.hbm [resolvable:$true] %s138
          %s140 = sshll.u32 %s130, 4
          %s141 = int_to_ptr.vmem [resolvable:$true] %s140
          %146 = dma.hbm_to_vmem [thread:$0]  %s139, 1024, %s141, %s127, 256, 256, 16
        $region20: #{tpu_custom_call.1} parent=15 // pred_fallthru
          _
      $region16: #{tpu_custom_call.1} parent=5 // pred_fallthru
        _
      %p147 = scmp.le.s32.totalorder 1, %s12
      %p148 = scmp.lt.s32.totalorder %s12, 3
      %p149 = pnand %p147, %p148
      %p150 = pneg %p149
      // Predicated region
      $region21: #{tpu_custom_call.1} parent=5 // pred_check
        _
      $region22: #{tpu_custom_call.1} parent=5 // pred_check_branch
        %152 = sbr.rel (%p149) target = $region24
      $region23: #{tpu_custom_call.1} parent=5 // pred_region
        %s153 = ssub.s32 %s12, 1
        %s154 = sand.u32 %s39, 1
        %s155 = scalar_lea.sflag [#allocation3], %s154
        %s156 = sand.u32 %s39, 1
        %s157 = smul.addr %s156, 64
        %s158 = scalar_lea.vmem [#allocation2], %s157
        // Predicated region
        $region25: #{tpu_custom_call.1} parent=23 // pred_check
          %p159 = pneg %p52
        $region26: #{tpu_custom_call.1} parent=23 // pred_check_branch
          %161 = sbr.rel (%p159) target = $region28
        $region27: #{tpu_custom_call.1} parent=23 // pred_region
          %163 = dma.done %s155, 1024
        $region28: #{tpu_custom_call.1} parent=23 // pred_fallthru
          _
        %s164 = sand.u32 %s39, 1
        %s165 = scalar_lea.sflag [#allocation3], %s164
        %s166 = sand.u32 %s39, 1
        %s167 = smul.addr %s166, 64
        %s168 = scalar_lea.vmem [#allocation2], %s167
        %p169 = pneg %p52
        %p170 = pneg %p49
        %p171 = pneg %p78
        %p172 = pneg %p75
        %p173 = scmp.lt.s32.totalorder %s21, 1
        %s174 = scalar_select %p173, %s21, 1
        %s175 = smul.addr %s174, 4
        %s176 = smul.addr %s175, 8
        %s177 = scalar_lea.vmem %s1, %s176
        %p178 = pneg %p104
        %p179 = pneg %p101
        %p180 = scmp.lt.s32.totalorder %s21, 1
        %s181 = scalar_select %p180, %s21, 1
        %s182 = smul.addr %s181, 4
        %s183 = smul.addr %s182, 8
        %s184 = scalar_lea.vmem %s2, %s183
        %s185 = smul.u32 2, %s22
        %p186 = scmp.lt.s32.totalorder %s21, 1
        %s187 = scalar_select %p186, %s21, 1
        %s188 = smul.addr %s187, 4
        %s189 = smul.addr %s188, 8
        %s190 = scalar_lea.vmem %s1, %s189
        %p191 = scmp.lt.s32.totalorder %s21, 1
        %s192 = scalar_select %p191, %s21, 1
        %s193 = smul.addr %s192, 4
        %s194 = smul.addr %s193, 8
        %s195 = scalar_lea.vmem %s2, %s194
        %p196 = scmp.eq.s32.totalorder %s22, 0
        // Predicated region
        $region29: #{tpu_custom_call.1} parent=23 // pred_check
          %p197 = pneg %p196
        $region30: #{tpu_custom_call.1} parent=23 // pred_check_branch
          %199 = sbr.rel (%p197) target = $region32
        $region31: #{tpu_custom_call.1} parent=23 // pred_region
          %vm200 = vcmask 7168
          %201 = vst.msk [vmem:[%s190] sm:$0xff] %vm200, 0.0
          %202 = vst.msk [vmem:[%s190 + $0x8] sm:$0xff] %vm200, 0.0
          %203 = vst.msk [vmem:[%s190 + $0x10] sm:$0xff] %vm200, 0.0
          %204 = vst.msk [vmem:[%s190 + $0x18] sm:$0xff] %vm200, 0.0
          %205 = vst.msk [vmem:[%s195] sm:$0xff] %vm200, -inf
          %206 = vst.msk [vmem:[%s195 + $0x8] sm:$0xff] %vm200, -inf
          %207 = vst.msk [vmem:[%s195 + $0x10] sm:$0xff] %vm200, -inf
          %208 = vst.msk [vmem:[%s195 + $0x18] sm:$0xff] %vm200, -inf
        $region32: #{tpu_custom_call.1} parent=23 // pred_fallthru
          _
        %v209 = vld [vmem:[%s158] sm:$0xff]
        %v210 = vld [vmem:[%s158 + $0x8] sm:$0xff]
        %v211 = vld [vmem:[%s158 + $0x10] sm:$0xff]
        %v212 = vld [vmem:[%s158 + $0x18] sm:$0xff]
        %v213 = vld [vmem:[%s158 + $0x20] sm:$0xff]
        %v214 = vld [vmem:[%s158 + $0x28] sm:$0xff]
        %v215 = vld [vmem:[%s158 + $0x30] sm:$0xff]
        %v216 = vld [vmem:[%s158 + $0x38] sm:$0xff]
        %v217 = vadd.f32 %v209, %v210
        %218 = vadd.xlane.f32.xlu0 %v217
        %v219 = vpop.xlane.xlu0 %218
        %v220 = vadd.f32 %v211, %v212
        %221 = vadd.xlane.f32.xlu0 %v220
        %v222 = vpop.xlane.xlu0 %221
        %v223 = vadd.f32 %v213, %v214
        %224 = vadd.xlane.f32.xlu0 %v223
        %v225 = vpop.xlane.xlu0 %224
        %v226 = vadd.f32 %v215, %v216
        %227 = vadd.xlane.f32.xlu0 %v226
        %v228 = vpop.xlane.xlu0 %227
        %v229 = vmax.f32 %v209, %v210
        %230 = vmax.xlane.f32.xlu0 %v229
        %v231 = vpop.xlane.xlu0 %230
        %v232 = vmax.f32 %v211, %v212
        %233 = vmax.xlane.f32.xlu0 %v232
        %v234 = vpop.xlane.xlu0 %233
        %v235 = vmax.f32 %v213, %v214
        %236 = vmax.xlane.f32.xlu0 %v235
        %v237 = vpop.xlane.xlu0 %236
        %v238 = vmax.f32 %v215, %v216
        %239 = vmax.xlane.f32.xlu0 %v238
        %v240 = vpop.xlane.xlu0 %239
        %v241 = vld [vmem:[%s190] sm:$0xff]
        %v242 = vld [vmem:[%s190 + $0x8] sm:$0xff]
        %v243 = vld [vmem:[%s190 + $0x10] sm:$0xff]
        %v244 = vld [vmem:[%s190 + $0x18] sm:$0xff]
        %v245 = vadd.f32 %v241, %v219
        %v246 = vadd.f32 %v242, %v222
        %v247 = vadd.f32 %v243, %v225
        %v248 = vadd.f32 %v244, %v228
        %vm249 = vcmask 7168
        %250 = vst.msk [vmem:[%s190] sm:$0xff] %vm249, %v245
        %251 = vst.msk [vmem:[%s190 + $0x8] sm:$0xff] %vm249, %v246
        %252 = vst.msk [vmem:[%s190 + $0x10] sm:$0xff] %vm249, %v247
        %253 = vst.msk [vmem:[%s190 + $0x18] sm:$0xff] %vm249, %v248
        %v254 = vld [vmem:[%s195] sm:$0xff]
        %v255 = vld [vmem:[%s195 + $0x8] sm:$0xff]
        %v256 = vld [vmem:[%s195 + $0x10] sm:$0xff]
        %v257 = vld [vmem:[%s195 + $0x18] sm:$0xff]
        %v258 = vmax.f32 %v254, %v231
        %v259 = vmax.f32 %v255, %v234
        %v260 = vmax.f32 %v256, %v237
        %v261 = vmax.f32 %v257, %v240
        %262 = vst.msk [vmem:[%s195] sm:$0xff] %vm249, %v258
        %263 = vst.msk [vmem:[%s195 + $0x8] sm:$0xff] %vm249, %v259
        %264 = vst.msk [vmem:[%s195 + $0x10] sm:$0xff] %vm249, %v260
        %265 = vst.msk [vmem:[%s195 + $0x18] sm:$0xff] %vm249, %v261
        %p266 = scmp.lt.s32.totalorder %s21, 1
        %s267 = scalar_select %p266, %s21, 1
        %s268 = smul.addr %s267, 4
        %s269 = smul.addr %s268, 8
        %s270 = scalar_lea.vmem %s1, %s269
        %p271 = scmp.lt.s32.totalorder %s21, 1
        %s272 = scalar_select %p271, %s21, 1
        %s273 = smul.addr %s272, 4
        %s274 = smul.addr %s273, 8
        %s275 = scalar_lea.vmem %s2, %s274
        // Predicated region
        $region33: #{tpu_custom_call.1} parent=23 // pred_check
          %p276 = pneg %p75
        $region34: #{tpu_custom_call.1} parent=23 // pred_check_branch
          %278 = sbr.rel (%p276) target = $region36
        $region35: #{tpu_custom_call.1} parent=23 // pred_region
          _
        $region36: #{tpu_custom_call.1} parent=23 // pred_fallthru
          _
        // Predicated region
        $region37: #{tpu_custom_call.1} parent=23 // pred_check
          %p279 = pneg %p101
        $region38: #{tpu_custom_call.1} parent=23 // pred_check_branch
          %281 = sbr.rel (%p279) target = $region40
        $region39: #{tpu_custom_call.1} parent=23 // pred_region
          _
        $region40: #{tpu_custom_call.1} parent=23 // pred_fallthru
          _
      $region24: #{tpu_custom_call.1} parent=5 // pred_fallthru
        _
      %p282 = scmp.le.s32.totalorder 2, %s12
      // Predicated region
      $region41: #{tpu_custom_call.1} parent=5 // pred_check
        %p283 = pneg %p282
      $region42: #{tpu_custom_call.1} parent=5 // pred_check_branch
        %285 = sbr.rel (%p283) target = $region44
      $region43: #{tpu_custom_call.1} parent=5 // pred_region
        %s286 = ssub.s32 %s12, 2
        // Predicated region
        $region45: #{tpu_custom_call.1} parent=43 // pred_check
          %p287 = pneg %p81
        $region46: #{tpu_custom_call.1} parent=43 // pred_check_branch
          %289 = sbr.rel (%p287) target = $region48
        $region47: #{tpu_custom_call.1} parent=43 // pred_region
          %p290 = scmp.lt.s32.totalorder %s23, 1
          %s291 = scalar_select %p290, %s23, 1
          %s292 = smul.addr %s291, 4
          %s293 = smul.addr %s292, 8
          %s294 = scalar_lea.vmem %s1, %s293
        $region48: #{tpu_custom_call.1} parent=43 // pred_fallthru
          _
        // Predicated region
        $region49: #{tpu_custom_call.1} parent=43 // pred_check
          %p295 = pneg %p107
        $region50: #{tpu_custom_call.1} parent=43 // pred_check_branch
          %297 = sbr.rel (%p295) target = $region52
        $region51: #{tpu_custom_call.1} parent=43 // pred_region
          %p298 = scmp.lt.s32.totalorder %s23, 1
          %s299 = scalar_select %p298, %s23, 1
          %s300 = smul.addr %s299, 4
          %s301 = smul.addr %s300, 8
          %s302 = scalar_lea.vmem %s2, %s301
        $region52: #{tpu_custom_call.1} parent=43 // pred_fallthru
          _
      $region44: #{tpu_custom_call.1} parent=5 // pred_fallthru
        _
    $region6: #{tpu_custom_call.1} parent=1 // loop_footer
      %s16 = sadd.s32 1, %s12
    $region7: #{tpu_custom_call.1} parent=1 // loop_footer_branch
      %11 = sbr.rel target = $region3
    $region8: #{tpu_custom_call.1} parent=1 // loop_exit
      _
    %303 = vsyncpa [#allocation3], 1
    %s304 = scalar_lea.sflag [#allocation3], 1
    %305 = vsyncpa %s304, 1

</llo_original>
